<compile_context>
chip_gen: v6e
topology: v6e:2x2x1
jax: 0.10.0
libtpu: 0.0.40
codegen_flags: <defaults>
</compile_context>

<pallas_src>
import jax
import jax.numpy as jnp
from jax.experimental import pallas as pl
from jax.experimental.pallas import tpu as pltpu

BN_EPS = 1e-3   # ultralytics Conv uses BatchNorm2d(eps=0.001)


# ------------------------------ kernel ------------------------------------- #

def _fill_conv_slab(slab_ref, src, H, W, cin):
    """Fill the lane-dense conv LHS slab in VMEM.

    slab[h, kh*S + j*cin + c] = src_padded[h + kh, j, c],   S = (W + 2) * cin,
    where `src` is the lane-dense (H, W*cin) activation and src_padded has a
    1-px zero halo.  Every slab element is written on every call (either a zero
    border strip or interior data), so no cross-grid-step scratch assumptions
    and no full-buffer memset.  All slices are static; no reshapes.
    """
    S = (W + 2) * cin
    for kh in range(3):
        base = kh * S
        r0 = max(0, 1 - kh)          # first slab row with a valid source row
        r1 = min(H, H + 1 - kh)      # one past the last valid slab row
        if r0 > 0:                   # top halo row (kh == 0)
            slab_ref[0:r0, base:base + S] = jnp.zeros((r0, S), slab_ref.dtype)
        if r1 < H:                   # bottom halo row (kh == 2)
            slab_ref[r1:H, base:base + S] = jnp.zeros((H - r1, S), slab_ref.dtype)
        # left / right 1-px halo columns (cin lanes each)
        slab_ref[:, base:base + cin] = jnp.zeros((H, cin), slab_ref.dtype)
        slab_ref[:, base + (W + 1) * cin:base + S] = jnp.zeros((H, cin), slab_ref.dtype)
        # interior: source rows shifted by kh - 1
        slab_ref[r0:r1, base + cin:base + (W + 1) * cin] = src[r0 + kh - 1:r1 + kh - 1, :]


def _make_fused_kernel(H, W, c1, cm, c2, add):
    """Fused [RepConvN -> Conv (+residual)] kernel, one batch element / step."""

    def kernel(x_ref, w1_ref, b1_ref, w2_ref, b2_ref, o_ref, lhs1, lhs2):
        # x_ref : (1, H, W*c1)         bf16  lane-dense input tile
        # w1_ref: (3*(W+2)*c1, W*cm)   bf16  banded fused RepConvN weights
        # b1_ref: (1, W*cm)            f32   fused RepConvN bias (tiled over w)
        # w2_ref: (3*(W+2)*cm, W*c2)   bf16  banded fused cv2 weights
        # b2_ref: (1, W*c2)            f32   fused cv2 bias (tiled over w)
        # o_ref : (1, H, W*c2)               lane-dense output tile
        # lhs1  : (H, 3*(W+2)*c1)      bf16  VMEM conv slab for cv1
        # lhs2  : (H, 3*(W+2)*cm)      bf16  VMEM conv slab for cv2

        x = x_ref[0]                                     # (H, W*c1) bf16

        # ---- cv1: fused RepConvN 3x3 conv as ONE MXU matmul + bias + SiLU ---- #
        _fill_conv_slab(lhs1, x, H, W, c1)
        z1 = jnp.dot(lhs1[...], w1_ref[...], preferred_element_type=jnp.float32)
        z1 = z1 + b1_ref[...]
        y = z1 * jax.nn.sigmoid(z1)                      # SiLU, f32, (H, W*cm)

        # ---- cv2: 3x3 conv as ONE MXU matmul + bias + SiLU ------------------ #
        # Intermediate y stays in VMEM only (never written back to HBM).
        _fill_conv_slab(lhs2, y.astype(lhs2.dtype), H, W, cm)
        z2 = jnp.dot(lhs2[...], w2_ref[...], preferred_element_type=jnp.float32)
        z2 = z2 + b2_ref[...]
        z = z2 * jax.nn.sigmoid(z2)                      # SiLU, f32, (H, W*c2)

        if add:                                          # residual (c1 == c2)
            # Residual uses the bf16 input stream (PyTorch adds f32 x); the
            # bf16 quantization of the skip path is within test tolerance.
            z = z + x.astype(jnp.float32)

        o_ref[0] = z.astype(o_ref.dtype)                 # lane-dense, unmasked vst

    return kernel


# --------------------------- host-side folding ----------------------------- #

def _fold_bn(gamma, beta, mean, var, eps=BN_EPS):
    scale = gamma / jnp.sqrt(var + eps)
    return scale, beta - mean * scale


def _fuse_conv_bn(w_oihw, bn, eps=BN_EPS):
    """Conv2d(no bias) + BatchNorm2d -> (HWIO weight, per-channel bias)."""
    scale, bias = _fold_bn(*bn, eps=eps)
    w = w_oihw * scale[:, None, None, None]              # scale output channels
    return jnp.transpose(w, (2, 3, 1, 0)), bias          # OIHW -> HWIO


def _fuse_repconvn(params, eps=BN_EPS):
    """RepConvN (3x3+BN || 1x1+BN, self.bn=None) -> single 3x3 weight + bias.

    Same math as RepConvN.get_equivalent_kernel_bias (exact, by linearity).
    """
    w3, b3 = _fuse_conv_bn(params["rep_w3"], params["rep_bn3"], eps)  # (3,3,c1,cm)
    w1, b1 = _fuse_conv_bn(params["rep_w1"], params["rep_bn1"], eps)  # (1,1,c1,cm)
    w1 = jnp.pad(w1, ((1, 1), (1, 1), (0, 0), (0, 0)))                # pad to 3x3
    return w3 + w1, b3 + b1


def _banded_weight(w_hwio, W):
    """HWIO (3,3,Cin,Cout) -> banded (3*(W+2)*Cin, W*Cout) 'conv as one matmul'.

    Row index = (kh, j, cin) over the 3 padded input rows feeding one output
    row; col index = (w, cout).  Nonzero only where j - w in {0,1,2}, so the
    padded-out zeros of the band contribute exactly 0 to the matmul.
    """
    KH, KW, Cin, Cout = w_hwio.shape
    big = jnp.zeros((KH, W + 2, Cin, W, Cout), jnp.float32)
    for w in range(W):                                   # host-side, trace-time
        big = big.at[:, w:w + KW, :, w, :].set(w_hwio)
    return big.reshape(KH * (W + 2) * Cin, W * Cout)


# ------------------------------ wrapper ------------------------------------- #

def repn_bottleneck_forward(x_nchw, params, shortcut=True, out_dtype=jnp.float32):
    """RepNBottleneck forward. x: (N, c1, H, W) f32 -> (N, c2, H, W) out_dtype."""
    N, c1, H, W = x_nchw.shape
    w1_hwio, b1 = _fuse_repconvn(params)                            # c1 -> cm
    w2_hwio, b2 = _fuse_conv_bn(params["cv2_w"], params["cv2_bn"])  # cm -> c2
    cm, c2 = w1_hwio.shape[-1], w2_hwio.shape[-1]
    add = bool(shortcut) and (c1 == c2)

    # Banded single-matmul weights + biases tiled along w (lane-dense columns).
    w1_big = _banded_weight(w1_hwio, W).astype(jnp.bfloat16)   # (3*(W+2)*c1, W*cm)
    w2_big = _banded_weight(w2_hwio, W).astype(jnp.bfloat16)   # (3*(W+2)*cm, W*c2)
    b1_t = jnp.tile(b1, W).reshape(1, W * cm).astype(jnp.float32)
    b2_t = jnp.tile(b2, W).reshape(1, W * c2).astype(jnp.float32)

    # bf16 BEFORE the transpose (halves host transpose bytes), then a free
    # metadata reshape to the lane-dense (N, H, W*c1) layout.
    x_ld = jnp.transpose(x_nchw.astype(jnp.bfloat16), (0, 2, 3, 1)).reshape(N, H, W * c1)

    # VMEM budget -> explicit limit (instead of a hard-coded 64 MiB).
    slab1 = H * 3 * (W + 2) * c1
    slab2 = H * 3 * (W + 2) * cm
    vmem_bytes = (
        2 * (H * W * c1) * 2                                      # input blocks (bf16, 2x)
        + 2 * (H * W * c2) * jnp.dtype(out_dtype).itemsize        # output blocks (2x)
        + 2 * (int(w1_big.size) + int(w2_big.size)) * 2           # banded weights
        + 2 * (int(b1_t.size) + int(b2_t.size)) * 4               # biases
        + (slab1 + slab2) * 2                                     # conv LHS slabs
    )
    vmem_limit = int(min(112 * 2 ** 20, max(16 * 2 ** 20, 4 * vmem_bytes)))

    out_ld = pl.pallas_call(
        _make_fused_kernel(H, W, c1, cm, c2, add),
        out_shape=jax.ShapeDtypeStruct((N, H, W * c2), out_dtype),
        grid_spec=pltpu.PrefetchScalarGridSpec(
            num_scalar_prefetch=0,
            grid=(N,),
            in_specs=[
                pl.BlockSpec((1, H, W * c1), lambda b: (b, 0, 0)),
                pl.BlockSpec(w1_big.shape, lambda b: (0, 0)),
                pl.BlockSpec(b1_t.shape, lambda b: (0, 0)),
                pl.BlockSpec(w2_big.shape, lambda b: (0, 0)),
                pl.BlockSpec(b2_t.shape, lambda b: (0, 0)),
            ],
            out_specs=pl.BlockSpec((1, H, W * c2), lambda b: (b, 0, 0)),
            scratch_shapes=[
                pltpu.VMEM((H, 3 * (W + 2) * c1), jnp.bfloat16),
                pltpu.VMEM((H, 3 * (W + 2) * cm), jnp.bfloat16),
            ],
        ),
        compiler_params=pltpu.CompilerParams(
            dimension_semantics=("parallel",),          # batch across TCs (v7x)
            vmem_limit_bytes=vmem_limit,
        ),
    )(x_ld, w1_big, b1_t, w2_big, b2_t)

    # Free metadata reshape back to NHWC, then NCHW.
    return jnp.transpose(out_ld.reshape(N, H, W, c2), (0, 3, 1, 2))


# ----------------------- pure-JAX reference (f32) --------------------------- #

def _silu(x):
    return x * jax.nn.sigmoid(x)


def _conv_bn_nchw(x, w_oihw, bn, pad, eps=BN_EPS):
    y = jax.lax.conv_general_dilated(
        x, w_oihw, window_strides=(1, 1),
        padding=[(pad, pad), (pad, pad)],
        dimension_numbers=("NCHW", "OIHW", "NCHW"))
    gamma, beta, mean, var = bn
    inv = (gamma / jnp.sqrt(var + eps))[None, :, None, None]
    return (y - mean[None, :, None, None]) * inv + beta[None, :, None, None]


def repn_bottleneck_reference(x, params, shortcut=True):
    a = _conv_bn_nchw(x, params["rep_w3"], params["rep_bn3"], pad=1)
    b = _conv_bn_nchw(x, params["rep_w1"], params["rep_bn1"], pad=0)
    y = _silu(a + b)                                   # RepConvN (self.bn=None)
    z = _silu(_conv_bn_nchw(y, params["cv2_w"], params["cv2_bn"], pad=1))
    add = bool(shortcut) and (x.shape[1] == z.shape[1])
    return x + z if add else z


# ------------------------------ main ---------------------------------------- #

if __name__ == "__main__":
    key = jax.random.PRNGKey(0)
    N, c1, c2, H, W = 2, 8, 8, 16, 16
    e = 0.5
    cm = int(c2 * e)                                   # RepConvN hidden channels

    ks = jax.random.split(key, 8)

    def bn_params(k, c):
        k1, k2, k3, k4 = jax.random.split(k, 4)
        return (
            1.0 + 0.1 * jax.random.normal(k1, (c,), jnp.float32),             # gamma
            0.1 * jax.random.normal(k2, (c,), jnp.float32),                   # beta
            0.05 * jax.random.normal(k3, (c,), jnp.float32),                  # running_mean
            1.0 + 0.1 * jax.nn.softplus(jax.random.normal(k4, (c,), jnp.float32)),  # running_var
        )

    params = {
        # RepConvN branches (PyTorch OIHW conv weights, no conv bias) + BN
        "rep_w3": 0.1 * jax.random.normal(ks[0], (cm, c1, 3, 3), jnp.float32),
        "rep_bn3": bn_params(ks[1], cm),
        "rep_w1": 0.1 * jax.random.normal(ks[2], (cm, c1, 1, 1), jnp.float32),
        "rep_bn1": bn_params(ks[3], cm),
        # cv2 = Conv(cm, c2, 3, 1)
        "cv2_w": 0.1 * jax.random.normal(ks[4], (c2, cm, 3, 3), jnp.float32),
        "cv2_bn": bn_params(ks[5], c2),
    }
    x = jax.random.normal(ks[6], (N, c1, H, W), jnp.float32)

    out = jax.block_until_ready(repn_bottleneck_forward(x, params, shortcut=True))
    ref = jax.block_until_ready(repn_bottleneck_reference(x, params, shortcut=True))

    assert out.shape == (N, c2, H, W)
    err = jnp.abs(out - ref)
    # Kernel runs bf16 activations/weights (f32 accumulation) vs a pure-f32 ref.
    assert jnp.allclose(out, ref, atol=1e-1, rtol=1e-2), float(err.max())
    assert float(err.mean()) < 2e-2, float(err.mean())
    print("KERNEL_OK")
</pallas_src>

<mosaic_0001>
module attributes {stable_mosaic.version = 11 : i64} {
  func.func @kernel(%arg0: i32, %arg1: memref<1x16x128xbf16, #tpu.memory_space<vmem>>, %arg2: memref<432x64xbf16, #tpu.memory_space<vmem>>, %arg3: memref<1x64xf32, #tpu.memory_space<vmem>>, %arg4: memref<216x128xbf16, #tpu.memory_space<vmem>>, %arg5: memref<1x128xf32, #tpu.memory_space<vmem>>, %arg6: memref<1x16x128xf32, #tpu.memory_space<vmem>>, %arg7: memref<16x432xbf16, #tpu.memory_space<vmem>>, %arg8: memref<16x216xbf16, #tpu.memory_space<vmem>>) attributes {dimension_semantics = [#tpu.dimension_semantics<parallel>], iteration_bounds = array<i64: 2>, scalar_prefetch = 0 : i64, scratch_operands = 2 : i64, tpu.core_type = #tpu.core_type<tc>, window_params = [{transform_indices = @transform_0, window_bounds = array<i64: 1, 16, 128>}, {pipeline_mode = #tpu.pipeline_mode<synchronous>, transform_indices = @transform_1, window_bounds = array<i64: 432, 64>}, {pipeline_mode = #tpu.pipeline_mode<synchronous>, transform_indices = @transform_2, window_bounds = array<i64: 1, 64>}, {pipeline_mode = #tpu.pipeline_mode<synchronous>, transform_indices = @transform_3, window_bounds = array<i64: 216, 128>}, {pipeline_mode = #tpu.pipeline_mode<synchronous>, transform_indices = @transform_4, window_bounds = array<i64: 1, 128>}, {transform_indices = @transform_5, window_bounds = array<i64: 1, 16, 128>}]} {
    %c0 = arith.constant 0 : index
    %c0_0 = arith.constant 0 : index
    %c0_1 = arith.constant 0 : index
    %0 = vector.load %arg1[%c0, %c0_0, %c0_1] : memref<1x16x128xbf16, #tpu.memory_space<vmem>>, vector<1x16x128xbf16>
    %1 = vector.shape_cast %0 : vector<1x16x128xbf16> to vector<16x128xbf16>
    %cst = arith.constant 0.000000e+00 : bf16
    %2 = vector.broadcast %cst : bf16 to vector<1x144xbf16>
    %c0_2 = arith.constant 0 : index
    %c0_3 = arith.constant 0 : index
    %3 = vector.load %arg7[%c0_2, %c0_3] : memref<16x432xbf16, #tpu.memory_space<vmem>>, vector<1x144xbf16>
    tpu.vector_store %arg7[%c0_2, %c0_3], %2 {strides = array<i32>} : memref<16x432xbf16, #tpu.memory_space<vmem>>, vector<1x144xbf16>,
    %cst_4 = arith.constant 0.000000e+00 : bf16
    %4 = vector.broadcast %cst_4 : bf16 to vector<16x8xbf16>
    %c0_5 = arith.constant 0 : index
    %c0_6 = arith.constant 0 : index
    %5 = vector.load %arg7[%c0_5, %c0_6] : memref<16x432xbf16, #tpu.memory_space<vmem>>, vector<16x8xbf16>
    tpu.vector_store %arg7[%c0_5, %c0_6], %4 {strides = array<i32>} : memref<16x432xbf16, #tpu.memory_space<vmem>>, vector<16x8xbf16>,
    %cst_7 = arith.constant 0.000000e+00 : bf16
    %6 = vector.broadcast %cst_7 : bf16 to vector<16x8xbf16>
    %c0_8 = arith.constant 0 : index
    %c136 = arith.constant 136 : index
    %7 = vector.load %arg7[%c0_8, %c136] : memref<16x432xbf16, #tpu.memory_space<vmem>>, vector<16x8xbf16>
    tpu.vector_store %arg7[%c0_8, %c136], %6 {strides = array<i32>} : memref<16x432xbf16, #tpu.memory_space<vmem>>, vector<16x8xbf16>,
    %8 = vector.extract_strided_slice %1 {offsets = [0, 0], sizes = [15, 128], strides = [1, 1]} : vector<16x128xbf16> to vector<15x128xbf16>
    %c1 = arith.constant 1 : index
    %c8 = arith.constant 8 : index
    %9 = vector.load %arg7[%c1, %c8] : memref<16x432xbf16, #tpu.memory_space<vmem>>, vector<15x128xbf16>
    tpu.vector_store %arg7[%c1, %c8], %8 {strides = array<i32>} : memref<16x432xbf16, #tpu.memory_space<vmem>>, vector<15x128xbf16>,
    %cst_9 = arith.constant 0.000000e+00 : bf16
    %10 = vector.broadcast %cst_9 : bf16 to vector<16x8xbf16>
    %c0_10 = arith.constant 0 : index
    %c144 = arith.constant 144 : index
    %11 = vector.load %arg7[%c0_10, %c144] : memref<16x432xbf16, #tpu.memory_space<vmem>>, vector<16x8xbf16>
    tpu.vector_store %arg7[%c0_10, %c144], %10 {strides = array<i32>} : memref<16x432xbf16, #tpu.memory_space<vmem>>, vector<16x8xbf16>,
    %cst_11 = arith.constant 0.000000e+00 : bf16
    %12 = vector.broadcast %cst_11 : bf16 to vector<16x8xbf16>
    %c0_12 = arith.constant 0 : index
    %c280 = arith.constant 280 : index
    %13 = vector.load %arg7[%c0_12, %c280] : memref<16x432xbf16, #tpu.memory_space<vmem>>, vector<16x8xbf16>
    tpu.vector_store %arg7[%c0_12, %c280], %12 {strides = array<i32>} : memref<16x432xbf16, #tpu.memory_space<vmem>>, vector<16x8xbf16>,
    %c0_13 = arith.constant 0 : index
    %c152 = arith.constant 152 : index
    %14 = vector.load %arg7[%c0_13, %c152] : memref<16x432xbf16, #tpu.memory_space<vmem>>, vector<16x128xbf16>
    tpu.vector_store %arg7[%c0_13, %c152], %1 {strides = array<i32>} : memref<16x432xbf16, #tpu.memory_space<vmem>>, vector<16x128xbf16>,
    %cst_14 = arith.constant 0.000000e+00 : bf16
    %15 = vector.broadcast %cst_14 : bf16 to vector<1x144xbf16>
    %c15 = arith.constant 15 : index
    %c288 = arith.constant 288 : index
    %16 = vector.load %arg7[%c15, %c288] : memref<16x432xbf16, #tpu.memory_space<vmem>>, vector<1x144xbf16>
    tpu.vector_store %arg7[%c15, %c288], %15 {strides = array<i32>} : memref<16x432xbf16, #tpu.memory_space<vmem>>, vector<1x144xbf16>,
    %cst_15 = arith.constant 0.000000e+00 : bf16
    %17 = vector.broadcast %cst_15 : bf16 to vector<16x8xbf16>
    %c0_16 = arith.constant 0 : index
    %c288_17 = arith.constant 288 : index
    %18 = vector.load %arg7[%c0_16, %c288_17] : memref<16x432xbf16, #tpu.memory_space<vmem>>, vector<16x8xbf16>
    tpu.vector_store %arg7[%c0_16, %c288_17], %17 {strides = array<i32>} : memref<16x432xbf16, #tpu.memory_space<vmem>>, vector<16x8xbf16>,
    %cst_18 = arith.constant 0.000000e+00 : bf16
    %19 = vector.broadcast %cst_18 : bf16 to vector<16x8xbf16>
    %c0_19 = arith.constant 0 : index
    %c424 = arith.constant 424 : index
    %20 = vector.load %arg7[%c0_19, %c424] : memref<16x432xbf16, #tpu.memory_space<vmem>>, vector<16x8xbf16>
    tpu.vector_store %arg7[%c0_19, %c424], %19 {strides = array<i32>} : memref<16x432xbf16, #tpu.memory_space<vmem>>, vector<16x8xbf16>,
    %21 = vector.extract_strided_slice %1 {offsets = [1, 0], sizes = [15, 128], strides = [1, 1]} : vector<16x128xbf16> to vector<15x128xbf16>
    %c0_20 = arith.constant 0 : index
    %c296 = arith.constant 296 : index
    %22 = vector.load %arg7[%c0_20, %c296] : memref<16x432xbf16, #tpu.memory_space<vmem>>, vector<15x128xbf16>
    tpu.vector_store %arg7[%c0_20, %c296], %21 {strides = array<i32>} : memref<16x432xbf16, #tpu.memory_space<vmem>>, vector<15x128xbf16>,
    %c0_21 = arith.constant 0 : index
    %c0_22 = arith.constant 0 : index
    %23 = vector.load %arg7[%c0_21, %c0_22] : memref<16x432xbf16, #tpu.memory_space<vmem>>, vector<16x432xbf16>
    %c0_23 = arith.constant 0 : index
    %c0_24 = arith.constant 0 : index
    %24 = vector.load %arg2[%c0_23, %c0_24] : memref<432x64xbf16, #tpu.memory_space<vmem>>, vector<432x64xbf16>
    %cst_25 = arith.constant dense<0.000000e+00> : vector<16x64xf32>
    %25 = tpu.matmul %23, %24, %cst_25 {dimension_numbers = #tpu.dot_dimension_numbers<[1], [0], [0], [1], [0, 0, 1, 1], [], []>} : vector<16x432xbf16>, vector<432x64xbf16>, vector<16x64xf32> -> vector<16x64xf32>
    %c0_26 = arith.constant 0 : index
    %c0_27 = arith.constant 0 : index
    %26 = vector.load %arg3[%c0_26, %c0_27] : memref<1x64xf32, #tpu.memory_space<vmem>>, vector<1x64xf32>
    %27 = vector.broadcast %26 : vector<1x64xf32> to vector<16x64xf32>
    %28 = arith.addf %25, %27 : vector<16x64xf32>
    %29 = arith.negf %28 : vector<16x64xf32>
    %30 = math.exp %29 : vector<16x64xf32>
    %cst_28 = arith.constant 1.000000e+00 : f32
    %31 = vector.broadcast %cst_28 : f32 to vector<16x64xf32>
    %32 = arith.addf %31, %30 : vector<16x64xf32>
    %33 = arith.divf %31, %32 : vector<16x64xf32>
    %34 = arith.mulf %28, %33 : vector<16x64xf32>
    %35 = arith.truncf %34 : vector<16x64xf32> to vector<16x64xbf16>
    %cst_29 = arith.constant 0.000000e+00 : bf16
    %36 = vector.broadcast %cst_29 : bf16 to vector<1x72xbf16>
    %c0_30 = arith.constant 0 : index
    %c0_31 = arith.constant 0 : index
    %37 = vector.load %arg8[%c0_30, %c0_31] : memref<16x216xbf16, #tpu.memory_space<vmem>>, vector<1x72xbf16>
    tpu.vector_store %arg8[%c0_30, %c0_31], %36 {strides = array<i32>} : memref<16x216xbf16, #tpu.memory_space<vmem>>, vector<1x72xbf16>,
    %cst_32 = arith.constant 0.000000e+00 : bf16
    %38 = vector.broadcast %cst_32 : bf16 to vector<16x4xbf16>
    %c0_33 = arith.constant 0 : index
    %c0_34 = arith.constant 0 : index
    %39 = vector.load %arg8[%c0_33, %c0_34] : memref<16x216xbf16, #tpu.memory_space<vmem>>, vector<16x4xbf16>
    tpu.vector_store %arg8[%c0_33, %c0_34], %38 {strides = array<i32>} : memref<16x216xbf16, #tpu.memory_space<vmem>>, vector<16x4xbf16>,
    %cst_35 = arith.constant 0.000000e+00 : bf16
    %40 = vector.broadcast %cst_35 : bf16 to vector<16x4xbf16>
    %c0_36 = arith.constant 0 : index
    %c68 = arith.constant 68 : index
    %41 = vector.load %arg8[%c0_36, %c68] : memref<16x216xbf16, #tpu.memory_space<vmem>>, vector<16x4xbf16>
    tpu.vector_store %arg8[%c0_36, %c68], %40 {strides = array<i32>} : memref<16x216xbf16, #tpu.memory_space<vmem>>, vector<16x4xbf16>,
    %42 = vector.extract_strided_slice %35 {offsets = [0, 0], sizes = [15, 64], strides = [1, 1]} : vector<16x64xbf16> to vector<15x64xbf16>
    %c1_37 = arith.constant 1 : index
    %c4 = arith.constant 4 : index
    %43 = vector.load %arg8[%c1_37, %c4] : memref<16x216xbf16, #tpu.memory_space<vmem>>, vector<15x64xbf16>
    tpu.vector_store %arg8[%c1_37, %c4], %42 {strides = array<i32>} : memref<16x216xbf16, #tpu.memory_space<vmem>>, vector<15x64xbf16>,
    %cst_38 = arith.constant 0.000000e+00 : bf16
    %44 = vector.broadcast %cst_38 : bf16 to vector<16x4xbf16>
    %c0_39 = arith.constant 0 : index
    %c72 = arith.constant 72 : index
    %45 = vector.load %arg8[%c0_39, %c72] : memref<16x216xbf16, #tpu.memory_space<vmem>>, vector<16x4xbf16>
    tpu.vector_store %arg8[%c0_39, %c72], %44 {strides = array<i32>} : memref<16x216xbf16, #tpu.memory_space<vmem>>, vector<16x4xbf16>,
    %cst_40 = arith.constant 0.000000e+00 : bf16
    %46 = vector.broadcast %cst_40 : bf16 to vector<16x4xbf16>
    %c0_41 = arith.constant 0 : index
    %c140 = arith.constant 140 : index
    %47 = vector.load %arg8[%c0_41, %c140] : memref<16x216xbf16, #tpu.memory_space<vmem>>, vector<16x4xbf16>
    tpu.vector_store %arg8[%c0_41, %c140], %46 {strides = array<i32>} : memref<16x216xbf16, #tpu.memory_space<vmem>>, vector<16x4xbf16>,
    %c0_42 = arith.constant 0 : index
    %c76 = arith.constant 76 : index
    %48 = vector.load %arg8[%c0_42, %c76] : memref<16x216xbf16, #tpu.memory_space<vmem>>, vector<16x64xbf16>
    tpu.vector_store %arg8[%c0_42, %c76], %35 {strides = array<i32>} : memref<16x216xbf16, #tpu.memory_space<vmem>>, vector<16x64xbf16>,
    %cst_43 = arith.constant 0.000000e+00 : bf16
    %49 = vector.broadcast %cst_43 : bf16 to vector<1x72xbf16>
    %c15_44 = arith.constant 15 : index
    %c144_45 = arith.constant 144 : index
    %50 = vector.load %arg8[%c15_44, %c144_45] : memref<16x216xbf16, #tpu.memory_space<vmem>>, vector<1x72xbf16>
    tpu.vector_store %arg8[%c15_44, %c144_45], %49 {strides = array<i32>} : memref<16x216xbf16, #tpu.memory_space<vmem>>, vector<1x72xbf16>,
    %cst_46 = arith.constant 0.000000e+00 : bf16
    %51 = vector.broadcast %cst_46 : bf16 to vector<16x4xbf16>
    %c0_47 = arith.constant 0 : index
    %c144_48 = arith.constant 144 : index
    %52 = vector.load %arg8[%c0_47, %c144_48] : memref<16x216xbf16, #tpu.memory_space<vmem>>, vector<16x4xbf16>
    tpu.vector_store %arg8[%c0_47, %c144_48], %51 {strides = array<i32>} : memref<16x216xbf16, #tpu.memory_space<vmem>>, vector<16x4xbf16>,
    %cst_49 = arith.constant 0.000000e+00 : bf16
    %53 = vector.broadcast %cst_49 : bf16 to vector<16x4xbf16>
    %c0_50 = arith.constant 0 : index
    %c212 = arith.constant 212 : index
    %54 = vector.load %arg8[%c0_50, %c212] : memref<16x216xbf16, #tpu.memory_space<vmem>>, vector<16x4xbf16>
    tpu.vector_store %arg8[%c0_50, %c212], %53 {strides = array<i32>} : memref<16x216xbf16, #tpu.memory_space<vmem>>, vector<16x4xbf16>,
    %55 = vector.extract_strided_slice %35 {offsets = [1, 0], sizes = [15, 64], strides = [1, 1]} : vector<16x64xbf16> to vector<15x64xbf16>
    %c0_51 = arith.constant 0 : index
    %c148 = arith.constant 148 : index
    %56 = vector.load %arg8[%c0_51, %c148] : memref<16x216xbf16, #tpu.memory_space<vmem>>, vector<15x64xbf16>
    tpu.vector_store %arg8[%c0_51, %c148], %55 {strides = array<i32>} : memref<16x216xbf16, #tpu.memory_space<vmem>>, vector<15x64xbf16>,
    %c0_52 = arith.constant 0 : index
    %c0_53 = arith.constant 0 : index
    %57 = vector.load %arg8[%c0_52, %c0_53] : memref<16x216xbf16, #tpu.memory_space<vmem>>, vector<16x216xbf16>
    %c0_54 = arith.constant 0 : index
    %c0_55 = arith.constant 0 : index
    %58 = vector.load %arg4[%c0_54, %c0_55] : memref<216x128xbf16, #tpu.memory_space<vmem>>, vector<216x128xbf16>
    %cst_56 = arith.constant dense<0.000000e+00> : vector<16x128xf32>
    %59 = tpu.matmul %57, %58, %cst_56 {dimension_numbers = #tpu.dot_dimension_numbers<[1], [0], [0], [1], [0, 0, 1, 1], [], []>} : vector<16x216xbf16>, vector<216x128xbf16>, vector<16x128xf32> -> vector<16x128xf32>
    %c0_57 = arith.constant 0 : index
    %c0_58 = arith.constant 0 : index
    %60 = vector.load %arg5[%c0_57, %c0_58] : memref<1x128xf32, #tpu.memory_space<vmem>>, vector<1x128xf32>
    %61 = vector.broadcast %60 : vector<1x128xf32> to vector<16x128xf32>
    %62 = arith.addf %59, %61 : vector<16x128xf32>
    %63 = arith.negf %62 : vector<16x128xf32>
    %64 = math.exp %63 : vector<16x128xf32>
    %cst_59 = arith.constant 1.000000e+00 : f32
    %65 = vector.broadcast %cst_59 : f32 to vector<16x128xf32>
    %66 = arith.addf %65, %64 : vector<16x128xf32>
    %67 = arith.divf %65, %66 : vector<16x128xf32>
    %68 = arith.mulf %62, %67 : vector<16x128xf32>
    %69 = arith.extf %1 : vector<16x128xbf16> to vector<16x128xf32>
    %70 = arith.addf %68, %69 : vector<16x128xf32>
    %c0_60 = arith.constant 0 : index
    %c0_61 = arith.constant 0 : index
    %c0_62 = arith.constant 0 : index
    %71 = vector.load %arg6[%c0_60, %c0_61, %c0_62] : memref<1x16x128xf32, #tpu.memory_space<vmem>>, vector<1x16x128xf32>
    %72 = vector.shape_cast %71 : vector<1x16x128xf32> to vector<16x128xf32>
    %73 = vector.shape_cast %70 : vector<16x128xf32> to vector<1x16x128xf32>
    tpu.vector_store %arg6[%c0_60, %c0_61, %c0_62], %73 {strides = array<i32>} : memref<1x16x128xf32, #tpu.memory_space<vmem>>, vector<1x16x128xf32>,
    return
  }
  func.func @transform_0(%arg0: i32) -> (i32, i32, i32) {
    %c0_i32 = arith.constant 0 : i32
    %c0_i32_0 = arith.constant 0 : i32
    %c0_i32_1 = arith.constant 0 : i32
    return %arg0, %c0_i32, %c0_i32_0 : i32, i32, i32
  }
  func.func @transform_1(%arg0: i32) -> (i32, i32) {
    %c0_i32 = arith.constant 0 : i32
    %c0_i32_0 = arith.constant 0 : i32
    %c0_i32_1 = arith.constant 0 : i32
    return %c0_i32, %c0_i32_0 : i32, i32
  }
  func.func @transform_2(%arg0: i32) -> (i32, i32) {
    %c0_i32 = arith.constant 0 : i32
    %c0_i32_0 = arith.constant 0 : i32
    %c0_i32_1 = arith.constant 0 : i32
    return %c0_i32, %c0_i32_0 : i32, i32
  }
  func.func @transform_3(%arg0: i32) -> (i32, i32) {
    %c0_i32 = arith.constant 0 : i32
    %c0_i32_0 = arith.constant 0 : i32
    %c0_i32_1 = arith.constant 0 : i32
    return %c0_i32, %c0_i32_0 : i32, i32
  }
  func.func @transform_4(%arg0: i32) -> (i32, i32) {
    %c0_i32 = arith.constant 0 : i32
    %c0_i32_0 = arith.constant 0 : i32
    %c0_i32_1 = arith.constant 0 : i32
    return %c0_i32, %c0_i32_0 : i32, i32
  }
  func.func @transform_5(%arg0: i32) -> (i32, i32, i32) {
    %c0_i32 = arith.constant 0 : i32
    %c0_i32_0 = arith.constant 0 : i32
    %c0_i32_1 = arith.constant 0 : i32
    return %arg0, %c0_i32, %c0_i32_0 : i32, i32, i32
  }
}

</mosaic_0001>

<llo_original>
// kernel: tpu_custom_call.1
$region0: #{tpu_custom_call.1}
  #allocation0 [shape = 'u32[]', space=smem, size = 0x4, offset = 0x4, fixed_abs, tag = 'smem constant byte address 0x4 - core index']
  #allocation1 [shape = 'u32[144,128]{1,0:T(1,128)}', space=vmem, size = 0x12000, scoped, tag = 'internal scratch']
  #allocation2 [shape = 'bf16[16,432]{1,0:T(8,128)(2,1)}', space=vmem, size = 0x4000, scoped, tag = 'scratch operand']
  #allocation3 [shape = 'bf16[16,216]{1,0:T(8,128)(2,1)}', space=vmem, size = 0x2000, scoped, tag = 'scratch operand']
  %s0 = inlined_call_operand.vmem [shape: bf16[2,16,128], index: 0, kind: input, shape index: {}]
  %s1 = inlined_call_operand.vmem [shape: bf16[432,64], index: 1, kind: input, shape index: {}]
  %s2 = inlined_call_operand.vmem [shape: f32[1,64], index: 2, kind: input, shape index: {}]
  %s3 = inlined_call_operand.vmem [shape: bf16[216,128], index: 3, kind: input, shape index: {}]
  %s4 = inlined_call_operand.vmem [shape: f32[1,128], index: 4, kind: input, shape index: {}]
  %s5 = inlined_call_operand.hbm [shape: f32[2,16,128], index: 5, kind: output, shape index: {}]
  %s6 = sld [smem:[#allocation0]]
  $region53: #{tpu_custom_call.1} parent=0
    _
  %s8 = ssub.s32 1, %s6
  %s9 = scalar_select 0, %s8, %s6
  $region1: #{tpu_custom_call.1} parent=0
    #allocation4 [shape = 'u8[16384]{0}', space=vmem, size = 0x4000, scoped, tag = 'output window, operand 0']
    #allocation5 [shape = 's32[2]{0}', space=sflag, size = 0x8, scoped, tag = 'scoped memory for tpu_custom_call.1']
    %10 = vsyncpa [#allocation5], 0
    %s11 = scalar_lea.sflag [#allocation5], 1
    %12 = vsyncpa %s11, 0
    loop: start=0, step=1, limit=4
    $region2: #{tpu_custom_call.1} parent=1 // loop_pre_header
      _
    $region3: #{tpu_custom_call.1} parent=1 // loop_header
      %s14 = sphi 0, %s18
      %p15 = scmp.ge.s32.totalorder %s14, 4
      %s24 = sphi 0, %s26
      %s27 = sphi 0, %s24
      %s28 = sphi 0, %s27
      %s44 = sphi 0, %s28
      %s48 = sphi 0, %s48
      %s50 = sphi 0, %s48
      %s51 = sphi 0, %s50
      %s65 = sphi 0, %s51
      %s69 = sphi 0, %s69
      %s71 = sphi 0, %s69
      %s72 = sphi 0, %s71
      %s86 = sphi 0, %s72
      %s90 = sphi 0, %s90
      %s92 = sphi 0, %s90
      %s93 = sphi 0, %s92
      %s107 = sphi 0, %s93
      %s111 = sphi 0, %s111
      %s113 = sphi 0, %s111
      %s114 = sphi 0, %s113
      %s128 = sphi 0, %s114
      %s134 = sphi 0, %s136
      %s137 = sphi 0, %s134
      %s138 = sphi 0, %s137
      %s154 = sphi 0, %s138
    $region4: #{tpu_custom_call.1} parent=1 // loop_header_branch
      %17 = sbr.rel (%p15) target = $region8
    $region5: #{tpu_custom_call.1} parent=1 // loop_body
      %s19 = ssub.s32 %s14, 1
      %s20 = ssub.s32 %s14, 2
      %s21 = sadd.s32 %s14, 1
      %s22 = ssub.s32 %s14, %s21
      %p23 = scmp.eq.s32.totalorder %s22, 0
      %s25 = sadd.s32 %s24, 1
      %s26 = scalar_select %p23, %s24, %s25
      %p29 = pneg %p23
      %p30 = scmp.eq.s32.totalorder %s14, 1
      %p31 = por %p29, %p30
      %p32 = scmp.ne.s32.totalorder %s24, %s27
      %p33 = scmp.eq.s32.totalorder %s14, 0
      %p34 = por %p32, %p33
      %p35 = scmp.ne.s32.totalorder %s24, %s27
      %p36 = scmp.eq.s32.totalorder %s19, 1
      %p37 = por %p35, %p36
      %p38 = scmp.ne.s32.totalorder %s27, %s28
      %p39 = scmp.eq.s32.totalorder %s19, 0
      %p40 = por %p38, %p39
      %p41 = scmp.ne.s32.totalorder %s27, %s28
      %p42 = scmp.eq.s32.totalorder %s20, 1
      %p43 = por %p41, %p42
      %p45 = scmp.ne.s32.totalorder %s28, %s44
      %p46 = scmp.eq.s32.totalorder %s20, 0
      %p47 = por %p45, %p46
      %s49 = sadd.s32 %s48, 1
      %p52 = scmp.eq.s32.totalorder %s14, 1
      %p53 = scmp.ne.s32.totalorder %s48, %s50
      %p54 = scmp.eq.s32.totalorder %s14, 0
      %p55 = por %p53, %p54
      %p56 = scmp.ne.s32.totalorder %s48, %s50
      %p57 = scmp.eq.s32.totalorder %s19, 1
      %p58 = por %p56, %p57
      %p59 = scmp.ne.s32.totalorder %s50, %s51
      %p60 = scmp.eq.s32.totalorder %s19, 0
      %p61 = por %p59, %p60
      %p62 = scmp.ne.s32.totalorder %s50, %s51
      %p63 = scmp.eq.s32.totalorder %s20, 1
      %p64 = por %p62, %p63
      %p66 = scmp.ne.s32.totalorder %s51, %s65
      %p67 = scmp.eq.s32.totalorder %s20, 0
      %p68 = por %p66, %p67
      %s70 = sadd.s32 %s69, 1
      %p73 = scmp.eq.s32.totalorder %s14, 1
      %p74 = scmp.ne.s32.totalorder %s69, %s71
      %p75 = scmp.eq.s32.totalorder %s14, 0
      %p76 = por %p74, %p75
      %p77 = scmp.ne.s32.totalorder %s69, %s71
      %p78 = scmp.eq.s32.totalorder %s19, 1
      %p79 = por %p77, %p78
      %p80 = scmp.ne.s32.totalorder %s71, %s72
      %p81 = scmp.eq.s32.totalorder %s19, 0
      %p82 = por %p80, %p81
      %p83 = scmp.ne.s32.totalorder %s71, %s72
      %p84 = scmp.eq.s32.totalorder %s20, 1
      %p85 = por %p83, %p84
      %p87 = scmp.ne.s32.totalorder %s72, %s86
      %p88 = scmp.eq.s32.totalorder %s20, 0
      %p89 = por %p87, %p88
      %s91 = sadd.s32 %s90, 1
      %p94 = scmp.eq.s32.totalorder %s14, 1
      %p95 = scmp.ne.s32.totalorder %s90, %s92
      %p96 = scmp.eq.s32.totalorder %s14, 0
      %p97 = por %p95, %p96
      %p98 = scmp.ne.s32.totalorder %s90, %s92
      %p99 = scmp.eq.s32.totalorder %s19, 1
      %p100 = por %p98, %p99
      %p101 = scmp.ne.s32.totalorder %s92, %s93
      %p102 = scmp.eq.s32.totalorder %s19, 0
      %p103 = por %p101, %p102
      %p104 = scmp.ne.s32.totalorder %s92, %s93
      %p105 = scmp.eq.s32.totalorder %s20, 1
      %p106 = por %p104, %p105
      %p108 = scmp.ne.s32.totalorder %s93, %s107
      %p109 = scmp.eq.s32.totalorder %s20, 0
      %p110 = por %p108, %p109
      %s112 = sadd.s32 %s111, 1
      %p115 = scmp.eq.s32.totalorder %s14, 1
      %p116 = scmp.ne.s32.totalorder %s111, %s113
      %p117 = scmp.eq.s32.totalorder %s14, 0
      %p118 = por %p116, %p117
      %p119 = scmp.ne.s32.totalorder %s111, %s113
      %p120 = scmp.eq.s32.totalorder %s19, 1
      %p121 = por %p119, %p120
      %p122 = scmp.ne.s32.totalorder %s113, %s114
      %p123 = scmp.eq.s32.totalorder %s19, 0
      %p124 = por %p122, %p123
      %p125 = scmp.ne.s32.totalorder %s113, %s114
      %p126 = scmp.eq.s32.totalorder %s20, 1
      %p127 = por %p125, %p126
      %p129 = scmp.ne.s32.totalorder %s114, %s128
      %p130 = scmp.eq.s32.totalorder %s20, 0
      %p131 = por %p129, %p130
      %s132 = ssub.s32 %s14, %s21
      %p133 = scmp.eq.s32.totalorder %s132, 0
      %s135 = sadd.s32 %s134, 1
      %s136 = scalar_select %p133, %s134, %s135
      %p139 = pneg %p133
      %p140 = scmp.eq.s32.totalorder %s14, 1
      %p141 = por %p139, %p140
      %p142 = scmp.ne.s32.totalorder %s134, %s137
      %p143 = scmp.eq.s32.totalorder %s14, 0
      %p144 = por %p142, %p143
      %p145 = scmp.ne.s32.totalorder %s134, %s137
      %p146 = scmp.eq.s32.totalorder %s19, 1
      %p147 = por %p145, %p146
      %p148 = scmp.ne.s32.totalorder %s137, %s138
      %p149 = scmp.eq.s32.totalorder %s19, 0
      %p150 = por %p148, %p149
      %p151 = scmp.ne.s32.totalorder %s137, %s138
      %p152 = scmp.eq.s32.totalorder %s20, 1
      %p153 = por %p151, %p152
      %p155 = scmp.ne.s32.totalorder %s138, %s154
      %p156 = scmp.eq.s32.totalorder %s20, 0
      %p157 = por %p155, %p156
      %p158 = scmp.le.s32.totalorder 1, %s14
      %p159 = scmp.lt.s32.totalorder %s14, 3
      %p160 = pnand %p158, %p159
      %p161 = pneg %p160
      // Predicated region
      $region9: #{tpu_custom_call.1} parent=5 // pred_check
        _
      $region10: #{tpu_custom_call.1} parent=5 // pred_check_branch
        %163 = sbr.rel (%p160) target = $region12
      $region11: #{tpu_custom_call.1} parent=5 // pred_region
        %s164 = ssub.s32 %s14, 1
        // Predicated region
        $region13: #{tpu_custom_call.1} parent=11 // pred_check
          %p165 = pneg %p61
        $region14: #{tpu_custom_call.1} parent=11 // pred_check_branch
          %167 = sbr.rel (%p165) target = $region16
        $region15: #{tpu_custom_call.1} parent=11 // pred_region
          _
        $region16: #{tpu_custom_call.1} parent=11 // pred_fallthru
          _
        // Predicated region
        $region17: #{tpu_custom_call.1} parent=11 // pred_check
          %p168 = pneg %p82
        $region18: #{tpu_custom_call.1} parent=11 // pred_check_branch
          %170 = sbr.rel (%p168) target = $region20
        $region19: #{tpu_custom_call.1} parent=11 // pred_region
          _
        $region20: #{tpu_custom_call.1} parent=11 // pred_fallthru
          _
        // Predicated region
        $region21: #{tpu_custom_call.1} parent=11 // pred_check
          %p171 = pneg %p103
        $region22: #{tpu_custom_call.1} parent=11 // pred_check_branch
          %173 = sbr.rel (%p171) target = $region24
        $region23: #{tpu_custom_call.1} parent=11 // pred_region
          _
        $region24: #{tpu_custom_call.1} parent=11 // pred_fallthru
          _
        // Predicated region
        $region25: #{tpu_custom_call.1} parent=11 // pred_check
          %p174 = pneg %p124
        $region26: #{tpu_custom_call.1} parent=11 // pred_check_branch
          %176 = sbr.rel (%p174) target = $region28
        $region27: #{tpu_custom_call.1} parent=11 // pred_region
          _
        $region28: #{tpu_custom_call.1} parent=11 // pred_fallthru
          _
      $region12: #{tpu_custom_call.1} parent=5 // pred_fallthru
        _
      %p177 = scmp.lt.s32.totalorder %s14, 2
      // Predicated region
      $region29: #{tpu_custom_call.1} parent=5 // pred_check
        %p178 = pneg %p177
      $region30: #{tpu_custom_call.1} parent=5 // pred_check_branch
        %180 = sbr.rel (%p178) target = $region32
      $region31: #{tpu_custom_call.1} parent=5 // pred_region
        // Predicated region
        $region33: #{tpu_custom_call.1} parent=31 // pred_check
          %p181 = pneg %p34
        $region34: #{tpu_custom_call.1} parent=31 // pred_check_branch
          %183 = sbr.rel (%p181) target = $region36
        $region35: #{tpu_custom_call.1} parent=31 // pred_region
          %p184 = scmp.lt.s32.totalorder %s14, 1
          %s185 = scalar_select %p184, %s14, 1
          %s186 = smul.addr %s185, 2
          %s187 = smul.addr %s186, 4
          %s188 = scalar_lea.vmem %s0, %s187
        $region36: #{tpu_custom_call.1} parent=31 // pred_fallthru
          _
      $region32: #{tpu_custom_call.1} parent=5 // pred_fallthru
        _
      %p189 = scmp.le.s32.totalorder 1, %s14
      %p190 = scmp.lt.s32.totalorder %s14, 3
      %p191 = pnand %p189, %p190
      %p192 = pneg %p191
      // Predicated region
      $region37: #{tpu_custom_call.1} parent=5 // pred_check
        _
      $region38: #{tpu_custom_call.1} parent=5 // pred_check_branch
        %194 = sbr.rel (%p191) target = $region40
      $region39: #{tpu_custom_call.1} parent=5 // pred_region
        %s195 = ssub.s32 %s14, 1
        %p196 = scmp.lt.s32.totalorder %s19, 1
        %s197 = scalar_select %p196, %s19, 1
        %s198 = smul.addr %s197, 2
        %s199 = smul.addr %s198, 4
        %s200 = scalar_lea.vmem %s0, %s199
        %p201 = pneg %p40
        %p202 = pneg %p37
        %p203 = pneg %p61
        %p204 = pneg %p58
        %p205 = pneg %p82
        %p206 = pneg %p79
        %p207 = pneg %p103
        %p208 = pneg %p100
        %p209 = pneg %p124
        %p210 = pneg %p121
        %p211 = pneg %p150
        %p212 = pneg %p147
        %s213 = sand.u32 %s137, 1
        %s214 = scalar_lea.sflag [#allocation5], %s213
        %s215 = sand.u32 %s137, 1
        %s216 = smul.addr %s215, 16
        %s217 = scalar_lea.vmem [#allocation4], %s216
        %p218 = scmp.lt.s32.totalorder %s19, 1
        %s219 = scalar_select %p218, %s19, 1
        %s220 = smul.addr %s219, 2
        %s221 = smul.addr %s220, 4
        %s222 = scalar_lea.vmem %s0, %s221
        %v224 = vld [vmem:[%s222] sm:$0xf]
        %v225 = vld [vmem:[%s222 + $0x4] sm:$0xf]
        %vm226 = vcmask 1040384
        %vm227 = vsmask.f32 256
        %vm228 = vmand %vm226, %vm227
        %vm229 = vcmask 126980
        %vm230 = vsmask.f32 4352
        %vm231 = vmand %vm229, %vm230
        %vm232 = vmor %vm231, %vm228
        %v233 = vld [vmem:[#allocation2] sm:$0x11]
        %v234 = vsel %vm232, 0, %v233
        %235 = vst [vmem:[#allocation2] sm:$0x11] %v234
        %vm236 = vcmask 60416
        %237 = vst.msk [vmem:[#allocation2] sm:$0xf] %vm236, 0
        %238 = vst.msk [vmem:[#allocation2 + $0x10] sm:$0xf] %vm236, 0
        %vm239 = vcmask 126016
        %240 = vst.msk [vmem:[#allocation2 + $0x4] sm:$0xf] %vm239, 0
        %241 = vst.msk [vmem:[#allocation2 + $0x14] sm:$0xf] %vm239, 0
        %vm242 = vsmask.f32 4368
        %vm243 = vmor %vm227, %vm242
        %v245 = vshrl.u32 %v224, 16
        %v247 = vrot.slane %v245, 7
        %v248 = vshll.u32 %v224, 16
        %v250 = vor.u32 %v247, %v248
        %v251 = vrot.slane %v247, 4
        %v253 = vshrl.u32 %v225, 16
        %v255 = vrot.slane %v253, 7
        %v256 = vshll.u32 %v225, 16
        %v258 = vor.u32 %v255, %v256
        %v259 = vsel %vm243, %v251, %v258
        %260 = vrot.lane.b32.xlu0 %v250, 8
        %v261 = vpop.permute.xlu0 %260
        %262 = vrot.lane.b32.xlu0 %v259, 8
        %v263 = vpop.permute.xlu0 %262
        %v264 = vrot.slane %v261, 4
        %v265 = vrot.slane %v263, 4
        %vm266 = vcmask 64512
        %v267 = vsel %vm266, %v264, %v261
        %v268 = vsel %vm266, %v265, %v263
        %vm271 = vcmask 1043520
        %vm272 = vsmask.f32 7938
        %vm273 = vmand %vm271, %vm272
        %vm274 = vcmask 64516
        %vm275 = vsmask.f32 7954
        %vm276 = vmand %vm274, %vm275
        %vm277 = vmor %vm276, %vm273
        %v278 = vld [vmem:[#allocation2] sm:$0xff]
        %v279 = vsel %vm277, %v267, %v278
        %280 = vst [vmem:[#allocation2] sm:$0xff] %v279
        %vm281 = vcmask 1043520
        %vm282 = vcmask 64516
        %vm283 = vmor %vm282, %vm281
        %284 = vst.msk [vmem:[#allocation2 + $0x10] sm:$0xff] %vm283, %v268
        %vm285 = vcmask 191616
        %286 = vst.msk [vmem:[#allocation2 + $0x4] sm:$0xf] %vm285, 0
        %287 = vst.msk [vmem:[#allocation2 + $0x14] sm:$0xf] %vm285, 0
        %vm288 = vcmask 257216
        %289 = vst.msk [vmem:[#allocation2 + $0x8] sm:$0xf] %vm288, 0
        %290 = vst.msk [vmem:[#allocation2 + $0x18] sm:$0xf] %vm288, 0
        %293 = vrot.lane.b32.xlu0 %v224, 24
        %v294 = vpop.permute.xlu0 %293
        %295 = vrot.lane.b32.xlu0 %v225, 24
        %v296 = vpop.permute.xlu0 %295
        %v297 = vrot.slane %v294, 4
        %v298 = vrot.slane %v296, 4
        %vm299 = vcmask 195584
        %v300 = vsel %vm299, %v297, %v294
        %v301 = vsel %vm299, %v298, %v296
        %vm304 = vcmask 1043648
        %vm305 = vcmask 195588
        %vm306 = vmor %vm305, %vm304
        %307 = vst.msk [vmem:[#allocation2 + $0x4] sm:$0xff] %vm306, %v300
        %308 = vst.msk [vmem:[#allocation2 + $0x14] sm:$0xff] %vm306, %v301
        %vm309 = vcmask 1043715
        %vm310 = vsmask.f32 7950
        %vm311 = vmand %vm309, %vm310
        %vm312 = vcmask 392199
        %vm313 = vsmask.f32 7966
        %vm314 = vmand %vm312, %vm313
        %vm315 = vmor %vm314, %vm311
        %v316 = vld [vmem:[#allocation2 + $0x18] sm:$0x88]
        %v317 = vsel %vm315, 0, %v316
        %318 = vst [vmem:[#allocation2 + $0x18] sm:$0x88] %v317
        %vm319 = vcmask 322816
        %320 = vst.msk [vmem:[#allocation2 + $0x8] sm:$0xf] %vm319, 0
        %321 = vst.msk [vmem:[#allocation2 + $0x18] sm:$0xf] %vm319, 0
        %vm322 = vcmask 388416
        %323 = vst.msk [vmem:[#allocation2 + $0xc] sm:$0xf] %vm322, 0
        %324 = vst.msk [vmem:[#allocation2 + $0x1c] sm:$0xf] %vm322, 0
        %vm325 = vsmask.f32 3328
        %vm326 = vsmask.f32 7440
        %vm327 = vmor %vm325, %vm326
        %v328 = vrot.slane %v245, 4
        %v329 = vrot.slane %v248, 5
        %v330 = vor.u32 %v328, %v329
        %v331 = vrot.slane %v330, 4
        %v332 = vrot.slane %v256, 5
        %v333 = vsel %vm327, %v331, %v332
        %v334 = vrot.slane %v253, 4
        %v335 = vor.u32 %v334, %v332
        %v336 = vrot.slane %v335, 4
        %337 = vrot.lane.b32.xlu0 %v333, 40
        %v338 = vpop.permute.xlu0 %337
        %339 = vrot.lane.b32.xlu0 %v336, 40
        %v340 = vpop.permute.xlu0 %339
        %v341 = vrot.slane %v338, 4
        %v342 = vrot.slane %v340, 4
        %vm343 = vcmask 326656
        %v344 = vsel %vm343, %v341, %v338
        %v345 = vsel %vm343, %v342, %v340
        %vm348 = vcmask 1043776
        %vm349 = vcmask 326660
        %vm350 = vmor %vm349, %vm348
        %351 = vst.msk [vmem:[#allocation2 + $0x8] sm:$0xff] %vm350, %v344
        %vm352 = vcmask 1043776
        %vm353 = vmand %vm352, %vm325
        %vm354 = vcmask 326660
        %vm355 = vsmask.f32 7424
        %vm356 = vmand %vm354, %vm355
        %vm357 = vmor %vm356, %vm353
        %v358 = vld [vmem:[#allocation2 + $0x18] sm:$0xff]
        %v359 = vsel %vm357, %v345, %v358
        %360 = vst [vmem:[#allocation2 + $0x18] sm:$0xff] %v359
        %v361 = vld [vmem:[#allocation2] sm:$0xff]
        %v362 = vld [vmem:[#allocation2 + $0x8] sm:$0xff]
        %v363 = vld [vmem:[#allocation2 + $0x10] sm:$0xff]
        %v364 = vld [vmem:[#allocation2 + $0x18] sm:$0xff]
        %v365 = vld [vmem:[%s1] sm:$0xf]
        %v366 = vld [vmem:[%s1 + $0x4] sm:$0xf]
        %v367 = vld [vmem:[%s1 + $0x8] sm:$0xf]
        %v368 = vld [vmem:[%s1 + $0xc] sm:$0xf]
        %v369 = vld [vmem:[%s1 + $0x10] sm:$0xf]
        %v370 = vld [vmem:[%s1 + $0x14] sm:$0xf]
        %v371 = vld [vmem:[%s1 + $0x18] sm:$0xf]
        %v372 = vld [vmem:[%s1 + $0x1c] sm:$0xf]
        %v373 = vld [vmem:[%s1 + $0x20] sm:$0xf]
        %v374 = vld [vmem:[%s1 + $0x24] sm:$0xf]
        %v375 = vld [vmem:[%s1 + $0x28] sm:$0xf]
        %v376 = vld [vmem:[%s1 + $0x2c] sm:$0xf]
        %v377 = vld [vmem:[%s1 + $0x30] sm:$0xf]
        %v378 = vld [vmem:[%s1 + $0x34] sm:$0xf]
        %v379 = vld [vmem:[%s1 + $0x38] sm:$0xf]
        %v380 = vld [vmem:[%s1 + $0x3c] sm:$0xf]
        %v381 = vld [vmem:[%s1 + $0x40] sm:$0xf]
        %v382 = vld [vmem:[%s1 + $0x44] sm:$0xf]
        %v383 = vld [vmem:[%s1 + $0x48] sm:$0xf]
        %v384 = vld [vmem:[%s1 + $0x4c] sm:$0xf]
        %v385 = vld [vmem:[%s1 + $0x50] sm:$0xf]
        %v386 = vld [vmem:[%s1 + $0x54] sm:$0xf]
        %v387 = vld [vmem:[%s1 + $0x58] sm:$0xf]
        %v388 = vld [vmem:[%s1 + $0x5c] sm:$0xf]
        %v389 = vld [vmem:[%s1 + $0x60] sm:$0xf]
        %v390 = vld [vmem:[%s1 + $0x64] sm:$0xf]
        %v391 = vld [vmem:[%s1 + $0x68] sm:$0xf]
        %v392 = vld [vmem:[%s1 + $0x6c] sm:$0xf]
        %v393 = vld [vmem:[%s1 + $0x70] sm:$0xf]
        %v394 = vld [vmem:[%s1 + $0x74] sm:$0xf]
        %v395 = vld [vmem:[%s1 + $0x78] sm:$0xf]
        %v396 = vld [vmem:[%s1 + $0x7c] sm:$0xf]
        %v397 = vld [vmem:[%s1 + $0x80] sm:$0xf]
        %v398 = vld [vmem:[%s1 + $0x84] sm:$0xf]
        %v399 = vld [vmem:[%s1 + $0x88] sm:$0xf]
        %v400 = vld [vmem:[%s1 + $0x8c] sm:$0xf]
        %v401 = vld [vmem:[%s1 + $0x90] sm:$0xf]
        %v402 = vld [vmem:[%s1 + $0x94] sm:$0xf]
        %v403 = vld [vmem:[%s1 + $0x98] sm:$0xf]
        %v404 = vld [vmem:[%s1 + $0x9c] sm:$0xf]
        %v405 = vld [vmem:[%s1 + $0xa0] sm:$0xf]
        %v406 = vld [vmem:[%s1 + $0xa4] sm:$0xf]
        %v407 = vld [vmem:[%s1 + $0xa8] sm:$0xf]
        %v408 = vld [vmem:[%s1 + $0xac] sm:$0xf]
        %v409 = vld [vmem:[%s1 + $0xb0] sm:$0xf]
        %v410 = vld [vmem:[%s1 + $0xb4] sm:$0xf]
        %v411 = vld [vmem:[%s1 + $0xb8] sm:$0xf]
        %v412 = vld [vmem:[%s1 + $0xbc] sm:$0xf]
        %v413 = vld [vmem:[%s1 + $0xc0] sm:$0xf]
        %v414 = vld [vmem:[%s1 + $0xc4] sm:$0xf]
        %v415 = vld [vmem:[%s1 + $0xc8] sm:$0xf]
        %v416 = vld [vmem:[%s1 + $0xcc] sm:$0xf]
        %v417 = vld [vmem:[%s1 + $0xd0] sm:$0xf]
        %v418 = vld [vmem:[%s1 + $0xd4] sm:$0xf]
        %v419 = vld [vmem:[%s2] sm:$0x1]
        %v421 = vlaneseq
        %v422 = vshrl.u32 %v421, 7
        %v423 = vsub.s32 0, %v422
        %v424 = vrot.slane %v419, %v423
        %v430 = vunpack.c.l.b16 %v361
        %v431 = vunpack.c.h.b16 %v361
        %v432 = vunpack.c.l.b16 %v362
        %v433 = vunpack.c.h.b16 %v362
        %v434 = vunpack.c.l.b16 %v363
        %v435 = vunpack.c.h.b16 %v363
        %v436 = vunpack.c.l.b16 %v364
        %v437 = vunpack.c.h.b16 %v364
        %v438 = vpack.c.b16 %v434, %v430
        %v439 = vpack.c.b16 %v435, %v431
        %v440 = vpack.c.b16 %v436, %v432
        %v441 = vpack.c.b16 %v437, %v433
        %v499 = vunpack.c.l.b16 %v365
        %v500 = vunpack.c.l.b16 %v366
        %v501 = vunpack.c.l.b16 %v367
        %v502 = vunpack.c.l.b16 %v368
        %v503 = vunpack.c.l.b16 %v369
        %v504 = vunpack.c.l.b16 %v370
        %v505 = vunpack.c.l.b16 %v371
        %v506 = vunpack.c.l.b16 %v372
        %v507 = vunpack.c.l.b16 %v373
        %v508 = vunpack.c.l.b16 %v374
        %v509 = vunpack.c.l.b16 %v375
        %v510 = vunpack.c.l.b16 %v376
        %v511 = vunpack.c.l.b16 %v377
        %v512 = vunpack.c.l.b16 %v378
        %v513 = vunpack.c.l.b16 %v379
        %v514 = vunpack.c.l.b16 %v380
        %v515 = vunpack.c.l.b16 %v381
        %v516 = vunpack.c.l.b16 %v382
        %v517 = vunpack.c.l.b16 %v383
        %v518 = vunpack.c.l.b16 %v384
        %v519 = vunpack.c.l.b16 %v385
        %v520 = vunpack.c.l.b16 %v386
        %v521 = vunpack.c.l.b16 %v387
        %v522 = vunpack.c.l.b16 %v388
        %v523 = vunpack.c.l.b16 %v389
        %v524 = vunpack.c.l.b16 %v390
        %v525 = vunpack.c.l.b16 %v391
        %v526 = vunpack.c.l.b16 %v392
        %v527 = vunpack.c.l.b16 %v393
        %v528 = vunpack.c.l.b16 %v394
        %v529 = vunpack.c.l.b16 %v395
        %v530 = vunpack.c.l.b16 %v396
        %v531 = vunpack.c.l.b16 %v397
        %v532 = vunpack.c.l.b16 %v398
        %v533 = vunpack.c.l.b16 %v399
        %v534 = vunpack.c.l.b16 %v400
        %v535 = vunpack.c.l.b16 %v401
        %v536 = vunpack.c.l.b16 %v402
        %v537 = vunpack.c.l.b16 %v403
        %v538 = vunpack.c.l.b16 %v404
        %v539 = vunpack.c.l.b16 %v405
        %v540 = vunpack.c.l.b16 %v406
        %v541 = vunpack.c.l.b16 %v407
        %v542 = vunpack.c.l.b16 %v408
        %v543 = vunpack.c.l.b16 %v409
        %v544 = vunpack.c.l.b16 %v410
        %v545 = vunpack.c.l.b16 %v411
        %v546 = vunpack.c.l.b16 %v412
        %v547 = vunpack.c.l.b16 %v413
        %v548 = vunpack.c.l.b16 %v414
        %v549 = vunpack.c.l.b16 %v415
        %v550 = vunpack.c.l.b16 %v416
        %v551 = vunpack.c.l.b16 %v417
        %v552 = vunpack.c.l.b16 %v418
        %v553 = vpack.c.b16 %v500, %v499
        %v554 = vpack.c.b16 %v502, %v501
        %v555 = vpack.c.b16 %v504, %v503
        %v556 = vpack.c.b16 %v506, %v505
        %v557 = vpack.c.b16 %v508, %v507
        %v558 = vpack.c.b16 %v510, %v509
        %v559 = vpack.c.b16 %v512, %v511
        %v560 = vpack.c.b16 %v514, %v513
        %v561 = vpack.c.b16 %v516, %v515
        %v562 = vpack.c.b16 %v518, %v517
        %v563 = vpack.c.b16 %v520, %v519
        %v564 = vpack.c.b16 %v522, %v521
        %v565 = vpack.c.b16 %v524, %v523
        %v566 = vpack.c.b16 %v526, %v525
        %v567 = vpack.c.b16 %v528, %v527
        %v568 = vpack.c.b16 %v530, %v529
        %v569 = vpack.c.b16 %v532, %v531
        %v570 = vpack.c.b16 %v534, %v533
        %v571 = vpack.c.b16 %v536, %v535
        %v572 = vpack.c.b16 %v538, %v537
        %v573 = vpack.c.b16 %v540, %v539
        %v574 = vpack.c.b16 %v542, %v541
        %v575 = vpack.c.b16 %v544, %v543
        %v576 = vpack.c.b16 %v546, %v545
        %v577 = vpack.c.b16 %v548, %v547
        %v578 = vpack.c.b16 %v550, %v549
        %v579 = vpack.c.b16 %v552, %v551
        %vm607 = vcmask 392192
        %v609 = vsel %vm607, %v441, 0
        %611 = vmatprep.subr.bf16.mxu0 0
        %612 = vmatpush1.bf16.msra.mxu0 %v560
        %613 = vmatprep.subr.bf16.mxu0 0
        %614 = vmatpush1.bf16.msra.mxu0 %v559
        %615 = vmatprep.subr.bf16.mxu0 0
        %616 = vmatpush1.bf16.msra.mxu0 %v558
        %617 = vmatprep.subr.bf16.mxu0 0
        %618 = vmatpush1.bf16.msra.mxu0 %v557
        %619 = vmatprep.subr.bf16.mxu0 0
        %620 = vmatpush1.bf16.msra.mxu0 %v556
        %621 = vmatprep.subr.bf16.mxu0 0
        %622 = vmatpush1.bf16.msra.mxu0 %v555
        %623 = vmatprep.subr.bf16.mxu0 0
        %624 = vmatpush1.bf16.msra.mxu0 %v554
        %625 = vmatprep.subr.bf16.mxu0 0
        %626 = vmatpush1.bf16.msra.mxu0 %v553
        %627 = vmatprep.subr.bf16.mxu0 0
        %628 = vmatpush2.bf16.msra.mxu0 %v568
        %629 = vmatprep.subr.bf16.mxu0 0
        %630 = vmatpush2.bf16.msra.mxu0 %v567
        %631 = vmatprep.subr.bf16.mxu0 0
        %632 = vmatpush2.bf16.msra.mxu0 %v566
        %633 = vmatprep.subr.bf16.mxu0 0
        %634 = vmatpush2.bf16.msra.mxu0 %v565
        %635 = vmatprep.subr.bf16.mxu0 0
        %636 = vmatpush2.bf16.msra.mxu0 %v564
        %637 = vmatprep.subr.bf16.mxu0 0
        %638 = vmatpush2.bf16.msra.mxu0 %v563
        %639 = vmatprep.subr.bf16.mxu0 0
        %640 = vmatpush2.bf16.msra.mxu0 %v562
        %641 = vmatprep.subr.bf16.mxu0 0
        %642 = vmatpush2.bf16.msra.mxu0 %v561
        %643 = vmatprep.mubr.bf16.mxu0 %v439
        %644 = vmatmul.mubr.bf16.gmra.mxu0 %v438
        %v645 = vpop.f32.mrf.mxu0
        %v646 = vadd.f32 %v424, %v645
        %v647 = vpop.f32.mrf.mxu0
        %v648 = vpop.f32.mrf.mxu0
        %v649 = vadd.f32 %v424, %v648
        %v650 = vpop.f32.mrf.mxu0
        %651 = vdwg.mxu0
        %652 = vmatprep.subr.bf16.mxu0 0
        %653 = vmatpush1.bf16.msra.mxu0 %v576
        %654 = vmatprep.subr.bf16.mxu0 0
        %655 = vmatpush1.bf16.msra.mxu0 %v575
        %656 = vmatprep.subr.bf16.mxu0 0
        %657 = vmatpush1.bf16.msra.mxu0 %v574
        %658 = vmatprep.subr.bf16.mxu0 0
        %659 = vmatpush1.bf16.msra.mxu0 %v573
        %660 = vmatprep.subr.bf16.mxu0 0
        %661 = vmatpush1.bf16.msra.mxu0 %v572
        %662 = vmatprep.subr.bf16.mxu0 0
        %663 = vmatpush1.bf16.msra.mxu0 %v571
        %664 = vmatprep.subr.bf16.mxu0 0
        %665 = vmatpush1.bf16.msra.mxu0 %v570
        %666 = vmatprep.subr.bf16.mxu0 0
        %667 = vmatpush1.bf16.msra.mxu0 %v569
        %668 = vmatprep.subr.bf16.mxu0 0
        %669 = vmatpush2.bf16.msra.mxu0 0
        %670 = vmatprep.subr.bf16.mxu0 0
        %671 = vmatpush2.bf16.msra.mxu0 0
        %672 = vmatprep.subr.bf16.mxu0 0
        %673 = vmatpush2.bf16.msra.mxu0 0
        %674 = vmatprep.subr.bf16.mxu0 0
        %675 = vmatpush2.bf16.msra.mxu0 0
        %676 = vmatprep.subr.bf16.mxu0 0
        %677 = vmatpush2.bf16.msra.mxu0 0
        %678 = vmatprep.subr.bf16.mxu0 0
        %679 = vmatpush2.bf16.msra.mxu0 %v579
        %680 = vmatprep.subr.bf16.mxu0 0
        %681 = vmatpush2.bf16.msra.mxu0 %v578
        %682 = vmatprep.subr.bf16.mxu0 0
        %683 = vmatpush2.bf16.msra.mxu0 %v577
        %684 = vmatprep.mubr.bf16.mxu0 %v609
        %685 = vmatmul.mubr.bf16.gmra.mxu0 %v440
        %v686 = vpop.f32.mrf.mxu0
        %v687 = vadd.f32 %v646, %v686
        %v688 = vpop.f32.mrf.mxu0
        %v689 = vpop.f32.mrf.mxu0
        %v690 = vadd.f32 %v649, %v689
        %v691 = vpop.f32.mrf.mxu0
        %692 = vdwg.mxu0
        %v693 = vxor.u32 %v687, 2147483648
        %v694 = vxor.u32 %v690, 2147483648
        %v695 = vmul.f32 %v693, 1.442695
        %v696 = vpow.pop %v695
        %v697 = vmul.f32 %v694, 1.442695
        %v698 = vpow.pop %v697
        %v699 = vadd.f32 %v696, 1.0
        %v700 = vadd.f32 %v698, 1.0
        %v701 = vrcp.pop %v699
        %v702 = vmul.f32 1.0, %v701
        %v703 = vrcp.pop %v700
        %v704 = vmul.f32 1.0, %v703
        %v705 = vmul.f32 %v687, %v702
        %v706 = vmul.f32 %v690, %v704
        %v707 = vpack.c.bf16 %v706, %v705
        %vm708 = vcmask 581632
        %vm709 = vmand %vm708, %vm227
        %v710 = vld [vmem:[#allocation3] sm:$0x1]
        %v711 = vsel %vm709, 0, %v710
        %712 = vst [vmem:[#allocation3] sm:$0x1] %v711
        %vm713 = vcmask 27648
        %714 = vst.msk [vmem:[#allocation3] sm:$0xf] %vm713, 0
        %715 = vst.msk [vmem:[#allocation3 + $0x8] sm:$0xf] %vm713, 0
        %vm716 = vcmask 585248
        %717 = vst.msk [vmem:[#allocation3] sm:$0xf] %vm716, 0
        %718 = vst.msk [vmem:[#allocation3 + $0x8] sm:$0xf] %vm716, 0
        %v720 = vunpack.c.l.b16 %v707
        %v721 = vunpack.c.h.b16 %v707
        %v722 = vpack.c.b16 %v720, %v720
        %v723 = vpack.c.b16 %v721, %v721
        %v725 = vshrl.u32 %v722, 16
        %v727 = vrot.slane %v725, 7
        %v728 = vshll.u32 %v722, 16
        %v730 = vor.u32 %v727, %v728
        %v731 = vrot.slane %v727, 4
        %v733 = vshrl.u32 %v723, 16
        %v735 = vrot.slane %v733, 7
        %v736 = vshll.u32 %v723, 16
        %v738 = vor.u32 %v735, %v736
        %v739 = vsel %vm243, %v731, %v738
        %740 = vrot.lane.b32.xlu0 %v730, 4
        %v741 = vpop.permute.xlu0 %740
        %742 = vrot.lane.b32.xlu0 %v739, 4
        %v743 = vpop.permute.xlu0 %742
        %vm746 = vcmask 551968
        %vm747 = vmand %vm746, %vm272
        %v748 = vld [vmem:[#allocation3] sm:$0xf]
        %v749 = vsel %vm747, %v741, %v748
        %750 = vst [vmem:[#allocation3] sm:$0xf] %v749
        %vm751 = vcmask 551968
        %752 = vst.msk [vmem:[#allocation3 + $0x8] sm:$0xf] %vm751, %v743
        %vm753 = vcmask 618048
        %754 = vst.msk [vmem:[#allocation3] sm:$0xf] %vm753, 0
        %755 = vst.msk [vmem:[#allocation3 + $0x8] sm:$0xf] %vm753, 0
        %vm756 = vcmask 126048
        %757 = vst.msk [vmem:[#allocation3 + $0x4] sm:$0xf] %vm756, 0
        %758 = vst.msk [vmem:[#allocation3 + $0xc] sm:$0xf] %vm756, 0
        %759 = vrot.lane.b32.xlu0 %v722, 76
        %v760 = vpop.permute.xlu0 %759
        %761 = vrot.lane.b32.xlu0 %v723, 76
        %v762 = vpop.permute.xlu0 %761
        %v763 = vrot.slane %v760, 4
        %v764 = vrot.slane %v762, 4
        %vm765 = vcmask 621568
        %v766 = vsel %vm765, %v763, %v760
        %v767 = vsel %vm765, %v764, %v762
        %vm770 = vcmask 1044064
        %vm771 = vcmask 97284
        %vm772 = vmor %vm771, %vm770
        %773 = vst.msk [vmem:[#allocation3] sm:$0xff] %vm772, %v766
        %774 = vst.msk [vmem:[#allocation3 + $0x8] sm:$0xff] %vm772, %v767
        %vm775 = vcmask 715907
        %vm776 = vmand %vm775, %vm310
        %v777 = vld [vmem:[#allocation3 + $0xc] sm:$0x8]
        %v778 = vsel %vm776, 0, %v777
        %779 = vst [vmem:[#allocation3 + $0xc] sm:$0x8] %v778
        %vm780 = vcmask 158848
        %781 = vst.msk [vmem:[#allocation3 + $0x4] sm:$0xf] %vm780, 0
        %782 = vst.msk [vmem:[#allocation3 + $0xc] sm:$0xf] %vm780, 0
        %vm783 = vcmask 716448
        %784 = vst.msk [vmem:[#allocation3 + $0x4] sm:$0xf] %vm783, 0
        %785 = vst.msk [vmem:[#allocation3 + $0xc] sm:$0xf] %vm783, 0
        %v786 = vrot.slane %v725, 4
        %v787 = vrot.slane %v728, 5
        %v788 = vor.u32 %v786, %v787
        %v789 = vrot.slane %v788, 4
        %v790 = vrot.slane %v736, 5
        %v791 = vsel %vm327, %v789, %v790
        %v792 = vrot.slane %v733, 4
        %v793 = vor.u32 %v792, %v790
        %v794 = vrot.slane %v793, 4
        %795 = vrot.lane.b32.xlu0 %v791, 20
        %v796 = vpop.permute.xlu0 %795
        %797 = vrot.lane.b32.xlu0 %v794, 20
        %v798 = vpop.permute.xlu0 %797
        %vm801 = vcmask 683168
        %802 = vst.msk [vmem:[#allocation3 + $0x4] sm:$0xf] %vm801, %v796
        %vm803 = vcmask 683168
        %vm804 = vmand %vm803, %vm325
        %v805 = vld [vmem:[#allocation3 + $0xc] sm:$0xf]
        %v806 = vsel %vm804, %v798, %v805
        %807 = vst [vmem:[#allocation3 + $0xc] sm:$0xf] %v806
        %v808 = vld [vmem:[#allocation3] sm:$0xff]
        %v809 = vld [vmem:[#allocation3 + $0x8] sm:$0xff]
        %v810 = vld [vmem:[%s3] sm:$0xf]
        %v811 = vld [vmem:[%s3 + $0x4] sm:$0xf]
        %v812 = vld [vmem:[%s3 + $0x8] sm:$0xf]
        %v813 = vld [vmem:[%s3 + $0xc] sm:$0xf]
        %v814 = vld [vmem:[%s3 + $0x10] sm:$0xf]
        %v815 = vld [vmem:[%s3 + $0x14] sm:$0xf]
        %v816 = vld [vmem:[%s3 + $0x18] sm:$0xf]
        %v817 = vld [vmem:[%s3 + $0x1c] sm:$0xf]
        %v818 = vld [vmem:[%s3 + $0x20] sm:$0xf]
        %v819 = vld [vmem:[%s3 + $0x24] sm:$0xf]
        %v820 = vld [vmem:[%s3 + $0x28] sm:$0xf]
        %v821 = vld [vmem:[%s3 + $0x2c] sm:$0xf]
        %v822 = vld [vmem:[%s3 + $0x30] sm:$0xf]
        %v823 = vld [vmem:[%s3 + $0x34] sm:$0xf]
        %v824 = vld [vmem:[%s3 + $0x38] sm:$0xf]
        %v825 = vld [vmem:[%s3 + $0x3c] sm:$0xf]
        %v826 = vld [vmem:[%s3 + $0x40] sm:$0xf]
        %v827 = vld [vmem:[%s3 + $0x44] sm:$0xf]
        %v828 = vld [vmem:[%s3 + $0x48] sm:$0xf]
        %v829 = vld [vmem:[%s3 + $0x4c] sm:$0xf]
        %v830 = vld [vmem:[%s3 + $0x50] sm:$0xf]
        %v831 = vld [vmem:[%s3 + $0x54] sm:$0xf]
        %v832 = vld [vmem:[%s3 + $0x58] sm:$0xf]
        %v833 = vld [vmem:[%s3 + $0x5c] sm:$0xf]
        %v834 = vld [vmem:[%s3 + $0x60] sm:$0xf]
        %v835 = vld [vmem:[%s3 + $0x64] sm:$0xf]
        %v836 = vld [vmem:[%s3 + $0x68] sm:$0xf]
        %v837 = vld [vmem:[%s4] sm:$0x1]
        %v839 = vlaneseq
        %v840 = vshrl.u32 %v839, 7
        %v841 = vsub.s32 0, %v840
        %v842 = vrot.slane %v837, %v841
        %v846 = vunpack.c.l.b16 %v808
        %v847 = vunpack.c.h.b16 %v808
        %v848 = vunpack.c.l.b16 %v809
        %v849 = vunpack.c.h.b16 %v809
        %v850 = vpack.c.b16 %v848, %v846
        %v851 = vpack.c.b16 %v849, %v847
        %v880 = vunpack.c.l.b16 %v810
        %v881 = vunpack.c.l.b16 %v811
        %v882 = vunpack.c.l.b16 %v812
        %v883 = vunpack.c.l.b16 %v813
        %v884 = vunpack.c.l.b16 %v814
        %v885 = vunpack.c.l.b16 %v815
        %v886 = vunpack.c.l.b16 %v816
        %v887 = vunpack.c.l.b16 %v817
        %v888 = vunpack.c.l.b16 %v818
        %v889 = vunpack.c.l.b16 %v819
        %v890 = vunpack.c.l.b16 %v820
        %v891 = vunpack.c.l.b16 %v821
        %v892 = vunpack.c.l.b16 %v822
        %v893 = vunpack.c.l.b16 %v823
        %v894 = vunpack.c.l.b16 %v824
        %v895 = vunpack.c.l.b16 %v825
        %v896 = vunpack.c.l.b16 %v826
        %v897 = vunpack.c.l.b16 %v827
        %v898 = vunpack.c.l.b16 %v828
        %v899 = vunpack.c.l.b16 %v829
        %v900 = vunpack.c.l.b16 %v830
        %v901 = vunpack.c.l.b16 %v831
        %v902 = vunpack.c.l.b16 %v832
        %v903 = vunpack.c.l.b16 %v833
        %v904 = vunpack.c.l.b16 %v834
        %v905 = vunpack.c.l.b16 %v835
        %v906 = vunpack.c.l.b16 %v836
        %v907 = vpack.c.b16 %v881, %v880
        %v908 = vpack.c.b16 %v883, %v882
        %v909 = vpack.c.b16 %v885, %v884
        %v910 = vpack.c.b16 %v887, %v886
        %v911 = vpack.c.b16 %v889, %v888
        %v912 = vpack.c.b16 %v891, %v890
        %v913 = vpack.c.b16 %v893, %v892
        %v914 = vpack.c.b16 %v895, %v894
        %v915 = vpack.c.b16 %v897, %v896
        %v916 = vpack.c.b16 %v899, %v898
        %v917 = vpack.c.b16 %v901, %v900
        %v918 = vpack.c.b16 %v903, %v902
        %v919 = vpack.c.b16 %v905, %v904
        %v920 = vpack.c.b16 %v906, %v906
        %vm934 = vcmask 719872
        %v936 = vsel %vm934, %v851, 0
        %vm938 = vcmask 1043456
        %v940 = vsel %vm938, %v920, 0
        %942 = vmatprep.subr.bf16.mxu0 0
        %943 = vmatpush1.bf16.msra.mxu0 %v914
        %944 = vmatprep.subr.bf16.mxu0 0
        %945 = vmatpush1.bf16.msra.mxu0 %v913
        %946 = vmatprep.subr.bf16.mxu0 0
        %947 = vmatpush1.bf16.msra.mxu0 %v912
        %948 = vmatprep.subr.bf16.mxu0 0
        %949 = vmatpush1.bf16.msra.mxu0 %v911
        %950 = vmatprep.subr.bf16.mxu0 0
        %951 = vmatpush1.bf16.msra.mxu0 %v910
        %952 = vmatprep.subr.bf16.mxu0 0
        %953 = vmatpush1.bf16.msra.mxu0 %v909
        %954 = vmatprep.subr.bf16.mxu0 0
        %955 = vmatpush1.bf16.msra.mxu0 %v908
        %956 = vmatprep.subr.bf16.mxu0 0
        %957 = vmatpush1.bf16.msra.mxu0 %v907
        %958 = vmatprep.subr.bf16.mxu0 0
        %959 = vmatpush2.bf16.msra.mxu0 0
        %960 = vmatprep.subr.bf16.mxu0 0
        %961 = vmatpush2.bf16.msra.mxu0 0
        %962 = vmatprep.subr.bf16.mxu0 0
        %963 = vmatpush2.bf16.msra.mxu0 %v940
        %964 = vmatprep.subr.bf16.mxu0 0
        %965 = vmatpush2.bf16.msra.mxu0 %v919
        %966 = vmatprep.subr.bf16.mxu0 0
        %967 = vmatpush2.bf16.msra.mxu0 %v918
        %968 = vmatprep.subr.bf16.mxu0 0
        %969 = vmatpush2.bf16.msra.mxu0 %v917
        %970 = vmatprep.subr.bf16.mxu0 0
        %971 = vmatpush2.bf16.msra.mxu0 %v916
        %972 = vmatprep.subr.bf16.mxu0 0
        %973 = vmatpush2.bf16.msra.mxu0 %v915
        %974 = vmatprep.mubr.bf16.mxu0 %v936
        %975 = vmatmul.mubr.bf16.gmra.mxu0 %v850
        %v976 = vpop.f32.mrf.mxu0
        %v977 = vadd.f32 %v842, %v976
        %v978 = vpop.f32.mrf.mxu0
        %v979 = vpop.f32.mrf.mxu0
        %v980 = vadd.f32 %v842, %v979
        %v981 = vpop.f32.mrf.mxu0
        %982 = vdwg.mxu0
        %v983 = vxor.u32 %v977, 2147483648
        %v984 = vxor.u32 %v980, 2147483648
        %v985 = vmul.f32 %v983, 1.442695
        %v986 = vpow.pop %v985
        %v987 = vmul.f32 %v984, 1.442695
        %v988 = vpow.pop %v987
        %v989 = vadd.f32 %v986, 1.0
        %v990 = vadd.f32 %v988, 1.0
        %v991 = vrcp.pop %v989
        %v992 = vmul.f32 1.0, %v991
        %v993 = vrcp.pop %v990
        %v994 = vmul.f32 1.0, %v993
        %v995 = vmul.f32 %v977, %v992
        %v996 = vmul.f32 %v980, %v994
        %v997 = vunpack.c.l.bf16 %v224
        %v998 = vunpack.c.l.bf16 %v225
        %v999 = vadd.f32 %v995, %v997
        %v1000 = vadd.f32 %v996, %v998
        %1001 = vst [vmem:[%s217] sm:$0xff] %v999
        %1002 = vst [vmem:[%s217 + $0x8] sm:$0xff] %v1000
        %s1003 = sand.u32 %s137, 1
        %s1004 = scalar_lea.sflag [#allocation5], %s1003
        %s1005 = sand.u32 %s137, 1
        %s1006 = smul.addr %s1005, 16
        %s1007 = scalar_lea.vmem [#allocation4], %s1006
        // Predicated region
        $region41: #{tpu_custom_call.1} parent=39 // pred_check
          %p1008 = pneg %p147
        $region42: #{tpu_custom_call.1} parent=39 // pred_check_branch
          %1010 = sbr.rel (%p1008) target = $region44
        $region43: #{tpu_custom_call.1} parent=39 // pred_region
          %s1012 = ssub.s32 256, 256
          %1013 = vsyncadd %s1004, %s1012
          %s1014 = smul.addr %s19, 2
          %s1015 = smul.addr %s1014, 128
          %s1016 = scalar_lea.hbm %s5, %s1015
          %s1017 = sshll.u32 %s1007, 4
          %s1018 = int_to_ptr.vmem [resolvable:$true] %s1017
          %1023 = dma.vmem_to_hbm [thread:$0]  %s1018, 256, %s1016, %s1004, 128, 128, 8
        $region44: #{tpu_custom_call.1} parent=39 // pred_fallthru
          _
      $region40: #{tpu_custom_call.1} parent=5 // pred_fallthru
        _
      %p1024 = scmp.le.s32.totalorder 2, %s14
      // Predicated region
      $region45: #{tpu_custom_call.1} parent=5 // pred_check
        %p1025 = pneg %p1024
      $region46: #{tpu_custom_call.1} parent=5 // pred_check_branch
        %1027 = sbr.rel (%p1025) target = $region48
      $region47: #{tpu_custom_call.1} parent=5 // pred_region
        %s1028 = ssub.s32 %s14, 2
        // Predicated region
        $region49: #{tpu_custom_call.1} parent=47 // pred_check
          %p1029 = pneg %p153
        $region50: #{tpu_custom_call.1} parent=47 // pred_check_branch
          %1031 = sbr.rel (%p1029) target = $region52
        $region51: #{tpu_custom_call.1} parent=47 // pred_region
          %s1032 = sand.u32 %s138, 1
          %s1033 = scalar_lea.sflag [#allocation5], %s1032
          %s1034 = sand.u32 %s138, 1
          %s1035 = smul.addr %s1034, 16
          %s1036 = scalar_lea.vmem [#allocation4], %s1035
          %1037 = dma.done %s1033, 256
        $region52: #{tpu_custom_call.1} parent=47 // pred_fallthru
          _
      $region48: #{tpu_custom_call.1} parent=5 // pred_fallthru
        _
    $region6: #{tpu_custom_call.1} parent=1 // loop_footer
      %s18 = sadd.s32 1, %s14
    $region7: #{tpu_custom_call.1} parent=1 // loop_footer_branch
      %13 = sbr.rel target = $region3
    $region8: #{tpu_custom_call.1} parent=1 // loop_exit
      _
    %1038 = vsyncpa [#allocation5], 1
    %s1039 = scalar_lea.sflag [#allocation5], 1
    %1040 = vsyncpa %s1039, 1

</llo_original>
